<compile_context>
chip_gen: v6e
topology: v6e:2x2x1
jax: 0.10.0
libtpu: 0.0.40
codegen_flags: <defaults>
</compile_context>

<pallas_src>
import jax
import jax.numpy as jnp
from jax.experimental import pallas as pl
from jax.experimental.pallas import tpu as pltpu

R = 32  # rev_lin out_features (RevLinear(num_joints, 32))


def _affine_kernel(x_ref, m_ref, b_ref, o_ref):
    # x_ref: (F_in,  tile_n)  flattened (joint, channel) features, frames on lanes
    # m_ref: (F_out, F_in)    folded forward-chain matrix
    # b_ref: (F_out, 1)       folded bias (broadcast over lanes)
    # o_ref: (F_out, tile_n)
    o_ref[...] = (
        jnp.dot(m_ref[...], x_ref[...], preferred_element_type=jnp.float32)
        + b_ref[...]
    ).astype(o_ref.dtype)


def fold_params(params):
    """Fold the affine forward chain into a single matrix/bias (weights only,
    independent of the data; call once outside jit/step in real use)."""
    A, Wd, bd, Wj, bj = (params["A"], params["Wd"], params["bd"],
                         params["Wj"], params["bj"])
    J, r = A.shape
    D, C = Wd.shape
    assert D == C, "residual in the block requires dimesion_layer dim_out == dim_in"
    # TODO(synk): pinv (SVD) has no Pallas equivalent; it only touches the tiny
    # weight matrix so it is computed once here, outside the kernel.
    pinvA = jnp.linalg.pinv(A)                                   # (R, J)
    At = A.T                                                     # (R, J)
    Pt = pinvA.T                                                 # (J, R)
    L1 = Pt @ Wj @ At                                            # (J, J)
    L2 = Pt @ At                                                 # (J, J)
    Bc = Pt @ (Wj @ jnp.broadcast_to(bd, (r, D)) + bj[:, None])  # (J, D)
    M = jnp.kron(L1, Wd) + jnp.kron(L2, jnp.eye(C, dtype=Wd.dtype))  # (J*D, J*C)
    b = Bc.reshape(J * D, 1)
    return M, b, D


def _round_up(a, m):
    return (a + m - 1) // m * m


def linear_forward(x, params, *, tile_n=2048):
    """x: [B, T, J, C] float32 -> [B, T, J, D] (D == C)."""
    B, T, J, C = x.shape
    M, b, D = fold_params(params)
    F_out, F_in = M.shape
    assert F_in == J * C

    N = B * T
    # Lane-dense layout: frames on the last (lane) axis. Pad N up to a multiple
    # of the tile size instead of asserting divisibility.
    tn = _round_up(min(tile_n, _round_up(N, 128)), 128)
    N_pad = _round_up(N, tn)

    xf = x.reshape(N, F_in)
    if N_pad != N:
        xf = jnp.pad(xf, ((0, N_pad - N), (0, 0)))
    xT = xf.T  # (F_in, N_pad) -- wrapper-side layout plumbing (XLA transpose)

    out = pl.pallas_call(
        _affine_kernel,
        out_shape=jax.ShapeDtypeStruct((F_out, N_pad), x.dtype),
        grid_spec=pltpu.PrefetchScalarGridSpec(
            num_scalar_prefetch=0,
            grid=(N_pad // tn,),
            in_specs=[
                pl.BlockSpec((F_in, tn), lambda i: (0, i)),      # frames tile
                pl.BlockSpec((F_out, F_in), lambda i: (0, 0)),   # folded matrix
                pl.BlockSpec((F_out, 1), lambda i: (0, 0)),      # folded bias
            ],
            out_specs=pl.BlockSpec((F_out, tn), lambda i: (0, i)),
        ),
        compiler_params=pltpu.CompilerParams(
            dimension_semantics=("parallel",)),   # megacore sharding on v7x
    )(xT, M.astype(x.dtype), b.astype(x.dtype))

    return out[:, :N].T.reshape(B, T, J, D)


def reference(x, params):
    """Pure-JAX mirror of the PyTorch forward for validation (un-folded chain)."""
    A, Wd, bd, Wj, bj = (params["A"], params["Wd"], params["bd"],
                         params["Wj"], params["bj"])
    pinvA = jnp.linalg.pinv(A)
    xt = jnp.swapaxes(x, 2, 3)                 # [B,T,C,J]
    y = jnp.swapaxes(xt @ A, 2, 3)             # [B,T,R,C]  rev_lin fwd
    res = y
    y = y @ Wd.T + bd                          # [B,T,R,D]  dimesion_layer
    yt = jnp.swapaxes(y, 2, 3) @ Wj.T + bj     # [B,T,D,R]  j layer
    y = jnp.swapaxes(yt, 2, 3) + res           # residual
    yt = jnp.swapaxes(y, 2, 3) @ pinvA         # [B,T,D,J]  rev_lin inverse
    return jnp.swapaxes(yt, 2, 3)              # [B,T,J,D]


if __name__ == "__main__":
    key = jax.random.PRNGKey(0)
    # Small shapes consistent with the module (J=17 joints, C=3 channels),
    # dim_in == dim_out required by the residual connection.
    B, T, J, C = 2, 8, 17, 3
    dim_in, dim_out = C, C

    k = jax.random.split(key, 6)
    x = jax.random.normal(k[0], (B, T, J, C), jnp.float32)
    params = {
        # rev_lin.A = torch.rand(32, J).T  -> shape (J, 32), uniform [0,1)
        "A": jax.random.uniform(k[1], (J, R), jnp.float32),
        "Wd": jax.random.normal(k[2], (dim_out, dim_in), jnp.float32) * 0.5,
        "bd": jax.random.normal(k[3], (dim_out,), jnp.float32) * 0.1,
        "Wj": jax.random.normal(k[4], (R, R), jnp.float32) * 0.1,
        "bj": jax.random.normal(k[5], (R,), jnp.float32) * 0.1,
    }

    out = linear_forward(x, params)
    out = jax.block_until_ready(out)

    ref = reference(x, params)
    assert out.shape == (B, T, J, dim_out), out.shape
    assert jnp.allclose(out, ref, atol=1e-3, rtol=1e-3), \
        float(jnp.max(jnp.abs(out - ref)))
    print("KERNEL_OK")
</pallas_src>

<mosaic_0001>
module attributes {stable_mosaic.version = 11 : i64} {
  func.func @_affine_kernel(%arg0: i32, %arg1: memref<51x128xf32, #tpu.memory_space<vmem>>, %arg2: memref<51x51xf32, #tpu.memory_space<vmem>>, %arg3: memref<51x1xf32, #tpu.memory_space<vmem>>, %arg4: memref<51x128xf32, #tpu.memory_space<vmem>>) attributes {dimension_semantics = [#tpu.dimension_semantics<parallel>], iteration_bounds = array<i64: 1>, scalar_prefetch = 0 : i64, scratch_operands = 0 : i64, tpu.core_type = #tpu.core_type<tc>, window_params = [{transform_indices = @transform_0, window_bounds = array<i64: 51, 128>}, {pipeline_mode = #tpu.pipeline_mode<synchronous>, transform_indices = @transform_1, window_bounds = array<i64: 51, 51>}, {pipeline_mode = #tpu.pipeline_mode<synchronous>, transform_indices = @transform_2, window_bounds = array<i64: 51, 1>}, {transform_indices = @transform_3, window_bounds = array<i64: 51, 128>}]} {
    %c0 = arith.constant 0 : index
    %c0_0 = arith.constant 0 : index
    %0 = vector.load %arg2[%c0, %c0_0] : memref<51x51xf32, #tpu.memory_space<vmem>>, vector<51x51xf32>
    %c0_1 = arith.constant 0 : index
    %c0_2 = arith.constant 0 : index
    %1 = vector.load %arg1[%c0_1, %c0_2] : memref<51x128xf32, #tpu.memory_space<vmem>>, vector<51x128xf32>
    %cst = arith.constant dense<0.000000e+00> : vector<51x128xf32>
    %2 = tpu.matmul %0, %1, %cst {dimension_numbers = #tpu.dot_dimension_numbers<[1], [0], [0], [1], [0, 0, 1, 1], [], []>} : vector<51x51xf32>, vector<51x128xf32>, vector<51x128xf32> -> vector<51x128xf32>
    %c0_3 = arith.constant 0 : index
    %c0_4 = arith.constant 0 : index
    %3 = vector.load %arg3[%c0_3, %c0_4] : memref<51x1xf32, #tpu.memory_space<vmem>>, vector<51x1xf32>
    %4 = vector.broadcast %3 : vector<51x1xf32> to vector<51x128xf32>
    %5 = arith.addf %2, %4 : vector<51x128xf32>
    %c0_5 = arith.constant 0 : index
    %c0_6 = arith.constant 0 : index
    %6 = vector.load %arg4[%c0_5, %c0_6] : memref<51x128xf32, #tpu.memory_space<vmem>>, vector<51x128xf32>
    tpu.vector_store %arg4[%c0_5, %c0_6], %5 {strides = array<i32>} : memref<51x128xf32, #tpu.memory_space<vmem>>, vector<51x128xf32>,
    return
  }
  func.func @transform_0(%arg0: i32) -> (i32, i32) {
    %c0_i32 = arith.constant 0 : i32
    %c0_i32_0 = arith.constant 0 : i32
    return %c0_i32, %arg0 : i32, i32
  }
  func.func @transform_1(%arg0: i32) -> (i32, i32) {
    %c0_i32 = arith.constant 0 : i32
    %c0_i32_0 = arith.constant 0 : i32
    %c0_i32_1 = arith.constant 0 : i32
    return %c0_i32, %c0_i32_0 : i32, i32
  }
  func.func @transform_2(%arg0: i32) -> (i32, i32) {
    %c0_i32 = arith.constant 0 : i32
    %c0_i32_0 = arith.constant 0 : i32
    %c0_i32_1 = arith.constant 0 : i32
    return %c0_i32, %c0_i32_0 : i32, i32
  }
  func.func @transform_3(%arg0: i32) -> (i32, i32) {
    %c0_i32 = arith.constant 0 : i32
    %c0_i32_0 = arith.constant 0 : i32
    return %c0_i32, %arg0 : i32, i32
  }
}

</mosaic_0001>

<llo_original>
// kernel: tpu_custom_call.1
$region0: #{tpu_custom_call.1}
  #allocation0 [shape = 'u32[]', space=smem, size = 0x4, offset = 0x4, fixed_abs, tag = 'smem constant byte address 0x4 - core index']
  #allocation1 [shape = 'u32[144,128]{1,0:T(1,128)}', space=vmem, size = 0x12000, scoped, tag = 'internal scratch']
  %s0 = inlined_call_operand.vmem [shape: f32[51,128], index: 0, kind: input, shape index: {}]
  %s1 = inlined_call_operand.hbm [shape: f32[51,51], index: 1, kind: input, shape index: {}]
  %s2 = inlined_call_operand.vmem [shape: f32[51,1], index: 2, kind: input, shape index: {}]
  %s3 = inlined_call_operand.hbm [shape: f32[51,128], index: 3, kind: output, shape index: {}]
  %s4 = sld [smem:[#allocation0]]
  $region26: #{tpu_custom_call.1} parent=0
    _
  %s6 = ssub.s32 1, %s4
  %s7 = scalar_select 0, %s6, %s4
  $region1: #{tpu_custom_call.1} parent=0
    #allocation2 [shape = 'u8[28672]{0}', space=vmem, size = 0x7000, scoped, tag = 'input window, operand 1, single buffered']
    #allocation3 [shape = 's32[1]{0}', space=sflag, size = 0x4, scoped, tag = 'scoped memory for tpu_custom_call.1']
    #allocation4 [shape = 's32[1]{0}', space=sflag, size = 0x4, scoped, tag = 'scoped memory for tpu_custom_call.1']
    #allocation5 [shape = 'u8[28672]{0}', space=vmem, size = 0x7000, scoped, tag = 'output window, operand 0, single buffered']
    %8 = vsyncpa [#allocation3], 0
    %9 = vsyncpa [#allocation4], 0
    // Predicated region
    $region2: #{tpu_custom_call.1} parent=1 // pred_check
      _
    $region3: #{tpu_custom_call.1} parent=1 // pred_check_branch
      %11 = sbr.rel (0) target = $region5
    $region4: #{tpu_custom_call.1} parent=1 // pred_region
      _
    $region5: #{tpu_custom_call.1} parent=1 // pred_fallthru
      _
    // Predicated region
    $region6: #{tpu_custom_call.1} parent=1 // pred_check
      _
    $region7: #{tpu_custom_call.1} parent=1 // pred_check_branch
      %13 = sbr.rel (0) target = $region9
    $region8: #{tpu_custom_call.1} parent=1 // pred_region
      %s15 = ssub.s32 896, 896
      %16 = vsyncadd [#allocation3], %s15
      %s17 = sshll.u32 [#allocation2], 4
      %s18 = int_to_ptr.vmem [resolvable:$true] %s17
      %23 = dma.hbm_to_vmem [thread:$0]  %s1, 896, %s18, [#allocation3], 128, 128, 8
    $region9: #{tpu_custom_call.1} parent=1 // pred_fallthru
      _
    // Predicated region
    $region10: #{tpu_custom_call.1} parent=1 // pred_check
      _
    $region11: #{tpu_custom_call.1} parent=1 // pred_check_branch
      %25 = sbr.rel (0) target = $region13
    $region12: #{tpu_custom_call.1} parent=1 // pred_region
      _
    $region13: #{tpu_custom_call.1} parent=1 // pred_fallthru
      _
    // Predicated region
    $region14: #{tpu_custom_call.1} parent=1 // pred_check
      _
    $region15: #{tpu_custom_call.1} parent=1 // pred_check_branch
      %27 = sbr.rel (0) target = $region17
    $region16: #{tpu_custom_call.1} parent=1 // pred_region
      %28 = dma.done [#allocation3], 896
    $region17: #{tpu_custom_call.1} parent=1 // pred_fallthru
      _
    %v29 = vld [vmem:[#allocation2] sm:$0xff]
    %v30 = vld [vmem:[#allocation2 + $0x8] sm:$0xff]
    %v31 = vld [vmem:[#allocation2 + $0x10] sm:$0xff]
    %v32 = vld [vmem:[#allocation2 + $0x18] sm:$0xff]
    %v33 = vld [vmem:[#allocation2 + $0x20] sm:$0xff]
    %v34 = vld [vmem:[#allocation2 + $0x28] sm:$0xff]
    %v35 = vld [vmem:[#allocation2 + $0x30] sm:$0x7]
    %v36 = vld [vmem:[%s0] sm:$0xff]
    %v37 = vld [vmem:[%s0 + $0x8] sm:$0xff]
    %v38 = vld [vmem:[%s0 + $0x10] sm:$0xff]
    %v39 = vld [vmem:[%s0 + $0x18] sm:$0xff]
    %v40 = vld [vmem:[%s0 + $0x20] sm:$0xff]
    %v41 = vld [vmem:[%s0 + $0x28] sm:$0xff]
    %v42 = vld [vmem:[%s0 + $0x30] sm:$0x7]
    %v43 = vld [vmem:[%s2] sm:$0xff]
    %v44 = vld [vmem:[%s2 + $0x8] sm:$0xff]
    %v45 = vld [vmem:[%s2 + $0x10] sm:$0xff]
    %v46 = vld [vmem:[%s2 + $0x18] sm:$0xff]
    %v47 = vld [vmem:[%s2 + $0x20] sm:$0xff]
    %v48 = vld [vmem:[%s2 + $0x28] sm:$0xff]
    %v49 = vld [vmem:[%s2 + $0x30] sm:$0x7]
    %51 = vset.pattern.permute.xlu0 0
    %52 = vperm.xlu0 %51, %v43
    %v53 = vpop.permute.xlu0 %52
    %56 = vset.pattern.permute.xlu0 0
    %57 = vperm.xlu0 %56, %v44
    %v58 = vpop.permute.xlu0 %57
    %61 = vset.pattern.permute.xlu0 0
    %62 = vperm.xlu0 %61, %v45
    %v63 = vpop.permute.xlu0 %62
    %66 = vset.pattern.permute.xlu0 0
    %67 = vperm.xlu0 %66, %v46
    %v68 = vpop.permute.xlu0 %67
    %71 = vset.pattern.permute.xlu0 0
    %72 = vperm.xlu0 %71, %v47
    %v73 = vpop.permute.xlu0 %72
    %76 = vset.pattern.permute.xlu0 0
    %77 = vperm.xlu0 %76, %v48
    %v78 = vpop.permute.xlu0 %77
    %81 = vset.pattern.permute.xlu0 0
    %82 = vperm.xlu0 %81, %v49
    %v83 = vpop.permute.xlu0 %82
    %vm85 = vcmask 416768
    %v87 = vsel %vm85, %v29, 0
    %v90 = vsel %vm85, %v30, 0
    %v93 = vsel %vm85, %v31, 0
    %v96 = vsel %vm85, %v32, 0
    %v99 = vsel %vm85, %v33, 0
    %v102 = vsel %vm85, %v34, 0
    %v105 = vsel %vm85, %v35, 0
    %vm107 = vcmask 1042432
    %v109 = vsel %vm107, %v42, 0
    %111 = vmatprep.subr.mxu0 0.0
    %112 = vmatpush1.msra.mxu0 0.0
    %113 = vmatprep.subr.mxu0 0.0
    %114 = vmatpush1.msra.mxu0 0.0
    %115 = vmatprep.subr.mxu0 0.0
    %116 = vmatpush1.msra.mxu0 0.0
    %117 = vmatprep.subr.mxu0 0.0
    %118 = vmatpush1.msra.mxu0 0.0
    %119 = vmatprep.subr.mxu0 0.0
    %120 = vmatpush1.msra.mxu0 0.0
    %121 = vmatprep.subr.mxu0 0.0
    %122 = vmatpush1.msra.mxu0 0.0
    %123 = vmatprep.subr.mxu0 0.0
    %124 = vmatpush1.msra.mxu0 0.0
    %125 = vmatprep.subr.mxu0 0.0
    %126 = vmatpush1.msra.mxu0 0.0
    %127 = vmatprep.subr.mxu0 0.0
    %128 = vmatpush1.msra.mxu0 0.0
    %129 = vmatprep.subr.mxu0 0.0
    %130 = vmatpush1.msra.mxu0 %v109
    %131 = vmatprep.subr.mxu0 0.0
    %132 = vmatpush1.msra.mxu0 %v41
    %133 = vmatprep.subr.mxu0 0.0
    %134 = vmatpush1.msra.mxu0 %v40
    %135 = vmatprep.subr.mxu0 0.0
    %136 = vmatpush1.msra.mxu0 %v39
    %137 = vmatprep.subr.mxu0 0.0
    %138 = vmatpush1.msra.mxu0 %v38
    %139 = vmatprep.subr.mxu0 0.0
    %140 = vmatpush1.msra.mxu0 %v37
    %141 = vmatprep.subr.mxu0 0.0
    %142 = vmatpush1.msra.mxu0 %v36
    %143 = vmatprep.subr.mxu0 0.0
    %144 = vmatpush2.msra.mxu0 0.0
    %145 = vmatprep.subr.mxu0 0.0
    %146 = vmatpush2.msra.mxu0 0.0
    %147 = vmatprep.subr.mxu0 0.0
    %148 = vmatpush2.msra.mxu0 0.0
    %149 = vmatprep.subr.mxu0 0.0
    %150 = vmatpush2.msra.mxu0 0.0
    %151 = vmatprep.subr.mxu0 0.0
    %152 = vmatpush2.msra.mxu0 0.0
    %153 = vmatprep.subr.mxu0 0.0
    %154 = vmatpush2.msra.mxu0 0.0
    %155 = vmatprep.subr.mxu0 0.0
    %156 = vmatpush2.msra.mxu0 0.0
    %157 = vmatprep.subr.mxu0 0.0
    %158 = vmatpush2.msra.mxu0 0.0
    %159 = vmatprep.subr.mxu0 0.0
    %160 = vmatpush2.msra.mxu0 0.0
    %161 = vmatprep.subr.mxu0 0.0
    %162 = vmatpush2.msra.mxu0 0.0
    %163 = vmatprep.subr.mxu0 0.0
    %164 = vmatpush2.msra.mxu0 0.0
    %165 = vmatprep.subr.mxu0 0.0
    %166 = vmatpush2.msra.mxu0 0.0
    %167 = vmatprep.subr.mxu0 0.0
    %168 = vmatpush2.msra.mxu0 0.0
    %169 = vmatprep.subr.mxu0 0.0
    %170 = vmatpush2.msra.mxu0 0.0
    %171 = vmatprep.subr.mxu0 0.0
    %172 = vmatpush2.msra.mxu0 0.0
    %173 = vmatprep.subr.mxu0 0.0
    %174 = vmatpush2.msra.mxu0 0.0
    %175 = vmatprep.mubr.f32.mxu0 0.0
    %176 = vmatmul.mubr.f32.gmra.mxu0 %v87
    %v177 = vpop.f32.mrf.mxu0
    %v178 = vadd.f32 %v53, %v177
    %v179 = vpop.f32.mrf.mxu0
    %180 = vmatprep.mubr.f32.mxu0 0.0
    %181 = vmatmul.mubr.f32.gmra.mxu0 %v90
    %v182 = vpop.f32.mrf.mxu0
    %v183 = vadd.f32 %v58, %v182
    %v184 = vpop.f32.mrf.mxu0
    %185 = vmatprep.mubr.f32.mxu0 0.0
    %186 = vmatmul.mubr.f32.gmra.mxu0 %v93
    %v187 = vpop.f32.mrf.mxu0
    %v188 = vadd.f32 %v63, %v187
    %v189 = vpop.f32.mrf.mxu0
    %190 = vmatprep.mubr.f32.mxu0 0.0
    %191 = vmatmul.mubr.f32.gmra.mxu0 %v96
    %v192 = vpop.f32.mrf.mxu0
    %v193 = vadd.f32 %v68, %v192
    %v194 = vpop.f32.mrf.mxu0
    %195 = vmatprep.mubr.f32.mxu0 0.0
    %196 = vmatmul.mubr.f32.gmra.mxu0 %v99
    %v197 = vpop.f32.mrf.mxu0
    %v198 = vadd.f32 %v73, %v197
    %v199 = vpop.f32.mrf.mxu0
    %200 = vmatprep.mubr.f32.mxu0 0.0
    %201 = vmatmul.mubr.f32.gmra.mxu0 %v102
    %v202 = vpop.f32.mrf.mxu0
    %v203 = vadd.f32 %v78, %v202
    %v204 = vpop.f32.mrf.mxu0
    %205 = vmatprep.mubr.f32.mxu0 0.0
    %206 = vmatmul.mubr.f32.gmra.mxu0 %v105
    %v207 = vpop.f32.mrf.mxu0
    %v208 = vadd.f32 %v83, %v207
    %v209 = vpop.f32.mrf.mxu0
    %210 = vdwg.mxu0
    %211 = vst [vmem:[#allocation5] sm:$0xff] %v178
    %212 = vst [vmem:[#allocation5 + $0x8] sm:$0xff] %v183
    %213 = vst [vmem:[#allocation5 + $0x10] sm:$0xff] %v188
    %214 = vst [vmem:[#allocation5 + $0x18] sm:$0xff] %v193
    %215 = vst [vmem:[#allocation5 + $0x20] sm:$0xff] %v198
    %216 = vst [vmem:[#allocation5 + $0x28] sm:$0xff] %v203
    %217 = vst [vmem:[#allocation5 + $0x30] sm:$0x7] %v208
    // Predicated region
    $region18: #{tpu_custom_call.1} parent=1 // pred_check
      _
    $region19: #{tpu_custom_call.1} parent=1 // pred_check_branch
      %219 = sbr.rel (0) target = $region21
    $region20: #{tpu_custom_call.1} parent=1 // pred_region
      %s221 = ssub.s32 896, 896
      %222 = vsyncadd [#allocation4], %s221
      %s223 = sshll.u32 [#allocation5], 4
      %s224 = int_to_ptr.vmem [resolvable:$true] %s223
      %229 = dma.vmem_to_hbm [thread:$0]  %s224, 896, %s3, [#allocation4], 128, 128, 8
    $region21: #{tpu_custom_call.1} parent=1 // pred_fallthru
      _
    // Predicated region
    $region22: #{tpu_custom_call.1} parent=1 // pred_check
      _
    $region23: #{tpu_custom_call.1} parent=1 // pred_check_branch
      %231 = sbr.rel (0) target = $region25
    $region24: #{tpu_custom_call.1} parent=1 // pred_region
      %232 = dma.done [#allocation4], 896
    $region25: #{tpu_custom_call.1} parent=1 // pred_fallthru
      _
    %233 = vsyncpa [#allocation3], 1
    %234 = vsyncpa [#allocation4], 1

</llo_original>
